<compile_context>
chip_gen: v6e
topology: v6e:2x2x1
jax: 0.10.0
libtpu: 0.0.40
codegen_flags: <defaults>
</compile_context>

<pallas_src>
import functools

import jax
import jax.numpy as jnp
from jax import lax
from jax.experimental import pallas as pl
from jax.experimental.pallas import tpu as pltpu

EPS = 1e-12
LANE = 128
# TODO(synk): real rescale baselines come from bert_score's per-model/per-layer
# baseline TSV; fixed synthetic constants are used here (deterministic, no I/O).
BASELINE_P = 0.80
BASELINE_R = 0.80
BASELINE_F = 0.80


def _round_up(x, m):
    return -(-x // m) * m


def _bertscore_kernel(hlen_ref, rlen_ref, hyp_ref, ref_ref, out_ref, *, baseline):
    """One block of `bb` sentence pairs per grid step (fully batched).

    hlen_ref, rlen_ref : (1, bb, 1)   int32  valid-token counts
    hyp_ref            : (bb, Lh, D)  bf16   hypothesis token embeddings
    ref_ref            : (bb, D, Lr)  bf16   reference embeddings (pre-transposed)
    out_ref            : (1, bb, 128) f32    lanes 0/1/2 = P/R/F per sentence
    """
    f32 = jnp.float32
    bb, Lh, _ = hyp_ref.shape
    Lr = ref_ref.shape[2]
    neg = f32(-1e9)
    bp, br, bf = (f32(b) for b in baseline)

    hlen = hlen_ref[0]                                     # (bb, 1) int32
    rlen = rlen_ref[0]                                     # (bb, 1) int32
    hlen_f = jnp.maximum(hlen.astype(f32), 1.0)            # guard padded rows
    rlen_f = jnp.maximum(rlen.astype(f32), 1.0)

    h_bf = hyp_ref[...]                                    # (bb, Lh, D) bf16
    r_bf = ref_ref[...]                                    # (bb, D, Lr) bf16

    # Inverse L2 norms in f32 (EUP rsqrt).  Normalization is applied to the
    # similarity AFTER the matmul so no big f32 normalized slabs are held.
    h32 = h_bf.astype(f32)
    r32 = r_bf.astype(f32)
    inv_h = lax.rsqrt(jnp.sum(h32 * h32, axis=2, keepdims=True) + EPS)   # (bb,Lh,1)
    inv_r = lax.rsqrt(jnp.sum(r32 * r32, axis=1, keepdims=True) + EPS)   # (bb,1,Lr)

    # Canonical batched (Lh, D) x (D, Lr) contraction on the MXU, f32 acc.
    sim = jnp.einsum("bqd,bdk->bqk", h_bf, r_bf,
                     preferred_element_type=jnp.float32)                 # (bb,Lh,Lr)
    sim = sim * inv_h * inv_r                                            # cosine

    # Masks from scalar lengths, built once per block in broadcast-ready shapes.
    hvalid = lax.broadcasted_iota(jnp.int32, (bb, Lh, 1), 1) < hlen[:, :, None]
    rvalid = lax.broadcasted_iota(jnp.int32, (bb, 1, Lr), 2) < rlen[:, :, None]

    # Greedy matching; masking folded into the max.
    p_tok = jnp.max(jnp.where(rvalid, sim, neg), axis=2, keepdims=True)  # (bb,Lh,1)
    r_tok = jnp.max(jnp.where(hvalid, sim, neg), axis=1, keepdims=True)  # (bb,1,Lr)

    # idf=False -> uniform weights over valid tokens.
    P = jnp.sum(p_tok * hvalid.astype(f32), axis=1) / hlen_f             # (bb, 1)
    R = jnp.sum(r_tok * rvalid.astype(f32), axis=2) / rlen_f             # (bb, 1)
    # NOTE: bert_score itself has no EPS here; it only guards 0/0 on padding.
    F = 2.0 * P * R / (P + R + EPS)

    Ps = (P - bp) / (1.0 - bp)
    Rs = (R - br) / (1.0 - br)
    Fs = (F - bf) / (1.0 - bf)

    out_ref[...] = jnp.zeros_like(out_ref)                 # lane-dense zero fill
    out_ref[0, pl.ds(0, bb), pl.ds(0, 1)] = Ps
    out_ref[0, pl.ds(0, bb), pl.ds(1, 1)] = Rs
    out_ref[0, pl.ds(0, bb), pl.ds(2, 1)] = Fs


def _pick_vmem_limit():
    """Generation-aware scoped-VMEM request."""
    cap = None
    try:
        cap = int(pltpu.get_tpu_info().vmem_capacity_bytes)
    except Exception:
        cap = None
    if not cap or cap <= 0:
        cap = 64 * 1024 * 1024        # conservative fallback (v7x per-TC VMEM)
    # v7x (64 MiB physical) -> ~48 MiB; v5e/v6e (128 MiB) -> ~96-100 MiB.
    return int(min(cap * 3 // 4, 100 * 1024 * 1024))


def _block_vmem_bytes(bb, lh, lr, d):
    in_bf16 = bb * (lh + lr) * d * 2           # one block of both bf16 inputs
    f32_tmp = bb * (lh + lr) * d * 4           # transient f32 casts for the norms
    sim_f32 = 2 * bb * lh * lr * 4             # sim + masked copy
    out_blk = 2 * bb * LANE * 4
    return 2 * in_bf16 + f32_tmp + sim_f32 + out_blk + (2 << 20)   # 2 MiB headroom


def _pick_bb(batch, lh, lr, d, vmem_limit):
    # Keep >= 2 grid blocks when the batch allows (v7x has 2 TensorCores).
    cap = max(1, -(-batch // 2)) if batch >= 2 else 1
    cap = min(cap, LANE)
    for cand in (128, 96, 64, 48, 32, 24, 16, 12, 8, 6, 4, 3, 2, 1):
        bb = min(cand, cap)
        if _block_vmem_bytes(bb, lh, lr, d) <= vmem_limit:
            return max(1, bb)
    return 1


def bertscore_pallas(hyp_emb, ref_emb, hyp_lens, ref_lens, *, bb=None,
                     baseline=(BASELINE_P, BASELINE_R, BASELINE_F)):
    """Per-sentence baseline-rescaled (P, R, F1), each of shape (B,)."""
    B, Lh, D = hyp_emb.shape
    _, Lr, _ = ref_emb.shape

    # Pad token axes for MXU/lane alignment (masks keep padded tokens neutral).
    Lh_p = _round_up(max(Lh, 8), 16)          # bf16 sublane pack
    Lr_p = _round_up(max(Lr, LANE), LANE)     # matmul N / lane axis

    vmem_limit = _pick_vmem_limit()
    if bb is None:
        bb = _pick_bb(B, Lh_p, Lr_p, D, vmem_limit)
    bb = int(max(1, min(bb, LANE)))

    nb = -(-B // bb)
    b_pad = nb * bb

    hyp = jnp.asarray(hyp_emb, jnp.bfloat16)          # bf16 in HBM (half bytes)
    ref = jnp.asarray(ref_emb, jnp.bfloat16)
    hyp = jnp.pad(hyp, ((0, b_pad - B), (0, Lh_p - Lh), (0, 0)))
    ref = jnp.pad(ref, ((0, b_pad - B), (0, Lr_p - Lr), (0, 0)))
    # Pre-transpose references to (B, D, Lr): kernel dot is a canonical
    # (Lh, D) x (D, Lr) contraction (no in-kernel RHS transpose).
    ref_t = jnp.transpose(ref, (0, 2, 1))

    hl = jnp.pad(jnp.asarray(hyp_lens, jnp.int32), (0, b_pad - B), constant_values=1)
    rl = jnp.pad(jnp.asarray(ref_lens, jnp.int32), (0, b_pad - B), constant_values=1)
    hl3 = hl.reshape(nb, bb, 1)
    rl3 = rl.reshape(nb, bb, 1)

    kernel = functools.partial(_bertscore_kernel, baseline=baseline)

    cost = pl.CostEstimate(
        flops=2 * b_pad * Lh_p * Lr_p * D + 4 * b_pad * (Lh_p + Lr_p) * D,
        transcendentals=b_pad * (Lh_p + Lr_p),
        bytes_accessed=b_pad * (Lh_p + Lr_p) * D * 2
                       + nb * bb * LANE * 4 + 2 * b_pad * 4,
    )

    out = pl.pallas_call(
        kernel,
        out_shape=jax.ShapeDtypeStruct((nb, bb, LANE), jnp.float32),
        grid=(nb,),
        in_specs=[
            pl.BlockSpec((1, bb, 1), lambda b: (b, 0, 0)),        # hyp lengths
            pl.BlockSpec((1, bb, 1), lambda b: (b, 0, 0)),        # ref lengths
            pl.BlockSpec((bb, Lh_p, D), lambda b: (b, 0, 0)),     # hypotheses
            pl.BlockSpec((bb, D, Lr_p), lambda b: (b, 0, 0)),     # refs (B,D,Lr)
        ],
        out_specs=pl.BlockSpec((1, bb, LANE), lambda b: (b, 0, 0)),
        compiler_params=pltpu.CompilerParams(
            dimension_semantics=("parallel",),
            vmem_limit_bytes=int(vmem_limit)),
        cost_estimate=cost,
    )(hl3, rl3, hyp, ref_t)

    prf = out[:, :, :3].reshape(b_pad, 3)[:B]
    return prf[:, 0], prf[:, 1], prf[:, 2]


def bert_scorer_forward(hyp_emb, ref_emb, hyp_lens, ref_lens, *, bb=None):
    """Equivalent of BertScorer.forward: torch.mean(f).item()."""
    _, _, f = bertscore_pallas(hyp_emb, ref_emb, hyp_lens, ref_lens, bb=bb)
    return jnp.mean(f)


def _reference_prf(hyp_emb, ref_emb, hyp_lens, ref_lens,
                   baseline=(BASELINE_P, BASELINE_R, BASELINE_F)):
    """Pure-JAX reference mirroring the kernel numerics (bf16 MXU operands,
    f32 accumulation, f32 post-matmul normalization)."""
    h = jnp.asarray(hyp_emb, jnp.bfloat16)
    r = jnp.asarray(ref_emb, jnp.bfloat16)
    h32 = h.astype(jnp.float32)
    r32 = r.astype(jnp.float32)
    inv_h = lax.rsqrt(jnp.sum(h32 * h32, -1) + EPS)               # (B, Lh)
    inv_r = lax.rsqrt(jnp.sum(r32 * r32, -1) + EPS)               # (B, Lr)
    sim = jnp.einsum("bqd,bkd->bqk", h, r, preferred_element_type=jnp.float32)
    sim = sim * inv_h[:, :, None] * inv_r[:, None, :]
    B, Lh = h.shape[:2]
    Lr = r.shape[1]
    hm = (jnp.arange(Lh)[None, :] < hyp_lens[:, None]).astype(jnp.float32)
    rm = (jnp.arange(Lr)[None, :] < ref_lens[:, None]).astype(jnp.float32)
    p_tok = jnp.max(jnp.where(rm[:, None, :] > 0, sim, -1e9), axis=2)
    r_tok = jnp.max(jnp.where(hm[:, :, None] > 0, sim, -1e9), axis=1)
    P = jnp.sum(p_tok * hm, axis=1) / jnp.maximum(jnp.sum(hm, axis=1), 1.0)
    R = jnp.sum(r_tok * rm, axis=1) / jnp.maximum(jnp.sum(rm, axis=1), 1.0)
    F = 2.0 * P * R / (P + R + EPS)
    bp, br, bf = baseline
    return (P - bp) / (1.0 - bp), (R - br) / (1.0 - br), (F - bf) / (1.0 - bf)


if __name__ == "__main__":
    key = jax.random.PRNGKey(0)
    B, Lh, Lr, D, V = 5, 8, 8, 32, 64

    k_tab, k_hyp, k_ref = jax.random.split(key, 3)
    # Deterministic synthetic "DistilBERT layer-5" embedding table (glue).
    # TODO(synk): real pipeline would run the DistilBERT encoder + tokenizer here.
    emb_table = jax.random.normal(k_tab, (V, D), jnp.float32).astype(jnp.bfloat16)

    hyp_ids = jax.random.randint(k_hyp, (B, Lh), 0, V)
    ref_ids = jax.random.randint(k_ref, (B, Lr), 0, V)

    hyp_lens = jnp.array([8, 6, 7, 5, 8], dtype=jnp.int32)
    ref_lens = jnp.array([7, 8, 6, 8, 4], dtype=jnp.int32)
    hmask = jnp.arange(Lh)[None, :] < hyp_lens[:, None]
    rmask = jnp.arange(Lr)[None, :] < ref_lens[:, None]

    hyp_emb = jnp.where(hmask[..., None], emb_table[hyp_ids], 0).astype(jnp.bfloat16)
    ref_emb = jnp.where(rmask[..., None], emb_table[ref_ids], 0).astype(jnp.bfloat16)

    # Auto bb: for B=5 -> bb=3, grid=(2,), one padded sentence (exercises padding
    # and >=2 blocks for v7x megacore balance).
    p, r, f = bertscore_pallas(hyp_emb, ref_emb, hyp_lens, ref_lens)
    score = bert_scorer_forward(hyp_emb, ref_emb, hyp_lens, ref_lens)
    score = jax.block_until_ready(score)

    p_ref, r_ref, f_ref = _reference_prf(hyp_emb, ref_emb, hyp_lens, ref_lens)
    ref_score = jnp.mean(f_ref)

    assert jnp.allclose(p, p_ref, atol=5e-3), (p, p_ref)
    assert jnp.allclose(r, r_ref, atol=5e-3), (r, r_ref)
    assert jnp.allclose(f, f_ref, atol=5e-3), (f, f_ref)
    assert abs(float(score) - float(ref_score)) < 1e-3, (
        f"mismatch: pallas={float(score)} ref={float(ref_score)}")

    print("KERNEL_OK")
</pallas_src>

<mosaic_0001>
module attributes {stable_mosaic.version = 11 : i64} {
  func.func @_bertscore_kernel(%arg0: i32, %arg1: memref<1x3x1xi32, #tpu.memory_space<vmem>>, %arg2: memref<1x3x1xi32, #tpu.memory_space<vmem>>, %arg3: memref<3x16x32xbf16, #tpu.memory_space<vmem>>, %arg4: memref<3x32x128xbf16, #tpu.memory_space<vmem>>, %arg5: memref<1x3x128xf32, #tpu.memory_space<vmem>>) attributes {dimension_semantics = [#tpu.dimension_semantics<parallel>], iteration_bounds = array<i64: 2>, scalar_prefetch = 0 : i64, scratch_operands = 0 : i64, tpu.core_type = #tpu.core_type<tc>, window_params = [{transform_indices = @transform_0, window_bounds = array<i64: 1, 3, 1>}, {transform_indices = @transform_1, window_bounds = array<i64: 1, 3, 1>}, {transform_indices = @transform_2, window_bounds = array<i64: 3, 16, 32>}, {transform_indices = @transform_3, window_bounds = array<i64: 3, 32, 128>}, {transform_indices = @transform_4, window_bounds = array<i64: 1, 3, 128>}]} {
    %c0 = arith.constant 0 : index
    %c0_0 = arith.constant 0 : index
    %c0_1 = arith.constant 0 : index
    %0 = vector.load %arg1[%c0, %c0_0, %c0_1] : memref<1x3x1xi32, #tpu.memory_space<vmem>>, vector<1x3x1xi32>
    %1 = vector.shape_cast %0 : vector<1x3x1xi32> to vector<3x1xi32>
    %c0_2 = arith.constant 0 : index
    %c0_3 = arith.constant 0 : index
    %c0_4 = arith.constant 0 : index
    %2 = vector.load %arg2[%c0_2, %c0_3, %c0_4] : memref<1x3x1xi32, #tpu.memory_space<vmem>>, vector<1x3x1xi32>
    %3 = vector.shape_cast %2 : vector<1x3x1xi32> to vector<3x1xi32>
    %4 = arith.sitofp %1 : vector<3x1xi32> to vector<3x1xf32>
    %cst = arith.constant 1.000000e+00 : f32
    %5 = vector.broadcast %cst : f32 to vector<3x1xf32>
    %6 = arith.maximumf %4, %5 : vector<3x1xf32>
    %7 = arith.sitofp %3 : vector<3x1xi32> to vector<3x1xf32>
    %cst_5 = arith.constant 1.000000e+00 : f32
    %8 = vector.broadcast %cst_5 : f32 to vector<3x1xf32>
    %9 = arith.maximumf %7, %8 : vector<3x1xf32>
    %c0_6 = arith.constant 0 : index
    %c0_7 = arith.constant 0 : index
    %c0_8 = arith.constant 0 : index
    %10 = vector.load %arg3[%c0_6, %c0_7, %c0_8] : memref<3x16x32xbf16, #tpu.memory_space<vmem>>, vector<3x16x32xbf16>
    %c0_9 = arith.constant 0 : index
    %c0_10 = arith.constant 0 : index
    %c0_11 = arith.constant 0 : index
    %11 = vector.load %arg4[%c0_9, %c0_10, %c0_11] : memref<3x32x128xbf16, #tpu.memory_space<vmem>>, vector<3x32x128xbf16>
    %12 = arith.extf %10 : vector<3x16x32xbf16> to vector<3x16x32xf32>
    %13 = arith.extf %11 : vector<3x32x128xbf16> to vector<3x32x128xf32>
    %14 = arith.mulf %12, %12 : vector<3x16x32xf32>
    %cst_12 = arith.constant dense<0.000000e+00> : vector<3x16xf32>
    %15 = vector.multi_reduction <add>, %14, %cst_12 [2] : vector<3x16x32xf32> to vector<3x16xf32>
    %16 = vector.shape_cast %15 : vector<3x16xf32> to vector<3x16x1xf32>
    %cst_13 = arith.constant 9.99999996E-13 : f32
    %17 = vector.broadcast %cst_13 : f32 to vector<3x16x1xf32>
    %18 = arith.addf %16, %17 : vector<3x16x1xf32>
    %19 = math.rsqrt %18 : vector<3x16x1xf32>
    %20 = arith.mulf %13, %13 : vector<3x32x128xf32>
    %cst_14 = arith.constant dense<0.000000e+00> : vector<3x128xf32>
    %21 = vector.multi_reduction <add>, %20, %cst_14 [1] : vector<3x32x128xf32> to vector<3x128xf32>
    %22 = vector.shape_cast %21 : vector<3x128xf32> to vector<3x1x128xf32>
    %cst_15 = arith.constant 9.99999996E-13 : f32
    %23 = vector.broadcast %cst_15 : f32 to vector<3x1x128xf32>
    %24 = arith.addf %22, %23 : vector<3x1x128xf32>
    %25 = math.rsqrt %24 : vector<3x1x128xf32>
    "tpu.trace_start"() <{level = 10 : i32, message = "bqd,bdk->bqk"}> : () -> ()
    %cst_16 = arith.constant dense<0.000000e+00> : vector<3x16x128xf32>
    %26 = tpu.matmul %10, %11, %cst_16 {dimension_numbers = #tpu.dot_dimension_numbers<[2], [1], [1], [2], [0, 0, 0, 1, 1, 2], [0], [0]>} : vector<3x16x32xbf16>, vector<3x32x128xbf16>, vector<3x16x128xf32> -> vector<3x16x128xf32>
    "tpu.trace_stop"() : () -> ()
    %27 = vector.broadcast %19 : vector<3x16x1xf32> to vector<3x16x128xf32>
    %28 = arith.mulf %26, %27 : vector<3x16x128xf32>
    %29 = vector.broadcast %25 : vector<3x1x128xf32> to vector<3x16x128xf32>
    %30 = arith.mulf %28, %29 : vector<3x16x128xf32>
    %31 = tpu.iota {dimensions = array<i32: 1>} : vector<3x16x1xi32>
    %32 = vector.shape_cast %1 : vector<3x1xi32> to vector<3x1x1xi32>
    %33 = vector.broadcast %32 : vector<3x1x1xi32> to vector<3x16x1xi32>
    %34 = arith.cmpi slt, %31, %33 : vector<3x16x1xi32>
    %35 = tpu.iota {dimensions = array<i32: 2>} : vector<3x1x128xi32>
    %36 = vector.shape_cast %3 : vector<3x1xi32> to vector<3x1x1xi32>
    %37 = vector.broadcast %36 : vector<3x1x1xi32> to vector<3x1x128xi32>
    %38 = arith.cmpi slt, %35, %37 : vector<3x1x128xi32>
    %cst_17 = arith.constant -1.000000e+09 : f32
    %39 = vector.shape_cast %38 : vector<3x1x128xi1> to vector<3x1x128xi1>
    %40 = vector.broadcast %39 : vector<3x1x128xi1> to vector<3x16x128xi1>
    %41 = vector.broadcast %cst_17 : f32 to vector<3x16x128xf32>
    %42 = arith.select %40, %30, %41 : vector<3x16x128xi1>, vector<3x16x128xf32>
    %cst_18 = arith.constant dense<0xFF800000> : vector<3x16xf32>
    %43 = vector.multi_reduction <maximumf>, %42, %cst_18 [2] : vector<3x16x128xf32> to vector<3x16xf32>
    %44 = vector.shape_cast %43 : vector<3x16xf32> to vector<3x16x1xf32>
    %cst_19 = arith.constant -1.000000e+09 : f32
    %45 = vector.shape_cast %34 : vector<3x16x1xi1> to vector<3x16x1xi1>
    %46 = vector.broadcast %45 : vector<3x16x1xi1> to vector<3x16x128xi1>
    %47 = vector.broadcast %cst_19 : f32 to vector<3x16x128xf32>
    %48 = arith.select %46, %30, %47 : vector<3x16x128xi1>, vector<3x16x128xf32>
    %cst_20 = arith.constant dense<0xFF800000> : vector<3x128xf32>
    %49 = vector.multi_reduction <maximumf>, %48, %cst_20 [1] : vector<3x16x128xf32> to vector<3x128xf32>
    %50 = vector.shape_cast %49 : vector<3x128xf32> to vector<3x1x128xf32>
    %51 = arith.extui %34 : vector<3x16x1xi1> to vector<3x16x1xi32>
    %52 = arith.sitofp %51 : vector<3x16x1xi32> to vector<3x16x1xf32>
    %53 = arith.mulf %44, %52 : vector<3x16x1xf32>
    %cst_21 = arith.constant dense<0.000000e+00> : vector<3x1xf32>
    %54 = vector.multi_reduction <add>, %53, %cst_21 [1] : vector<3x16x1xf32> to vector<3x1xf32>
    %55 = arith.divf %54, %6 : vector<3x1xf32>
    %56 = arith.extui %38 : vector<3x1x128xi1> to vector<3x1x128xi32>
    %57 = arith.sitofp %56 : vector<3x1x128xi32> to vector<3x1x128xf32>
    %58 = arith.mulf %50, %57 : vector<3x1x128xf32>
    %cst_22 = arith.constant dense<0.000000e+00> : vector<3x1xf32>
    %59 = vector.multi_reduction <add>, %58, %cst_22 [2] : vector<3x1x128xf32> to vector<3x1xf32>
    %60 = arith.divf %59, %9 : vector<3x1xf32>
    %cst_23 = arith.constant 2.000000e+00 : f32
    %61 = vector.broadcast %cst_23 : f32 to vector<3x1xf32>
    %62 = arith.mulf %61, %55 : vector<3x1xf32>
    %63 = arith.mulf %62, %60 : vector<3x1xf32>
    %64 = arith.addf %55, %60 : vector<3x1xf32>
    %cst_24 = arith.constant 9.99999996E-13 : f32
    %65 = vector.broadcast %cst_24 : f32 to vector<3x1xf32>
    %66 = arith.addf %64, %65 : vector<3x1xf32>
    %67 = arith.divf %63, %66 : vector<3x1xf32>
    %cst_25 = arith.constant 8.000000e-01 : f32
    %68 = vector.broadcast %cst_25 : f32 to vector<3x1xf32>
    %69 = arith.subf %55, %68 : vector<3x1xf32>
    %cst_26 = arith.constant 1.000000e+00 : f32
    %cst_27 = arith.constant 8.000000e-01 : f32
    %70 = arith.subf %cst_26, %cst_27 : f32
    %71 = vector.broadcast %70 : f32 to vector<3x1xf32>
    %72 = arith.divf %69, %71 : vector<3x1xf32>
    %cst_28 = arith.constant 8.000000e-01 : f32
    %73 = vector.broadcast %cst_28 : f32 to vector<3x1xf32>
    %74 = arith.subf %60, %73 : vector<3x1xf32>
    %cst_29 = arith.constant 1.000000e+00 : f32
    %cst_30 = arith.constant 8.000000e-01 : f32
    %75 = arith.subf %cst_29, %cst_30 : f32
    %76 = vector.broadcast %75 : f32 to vector<3x1xf32>
    %77 = arith.divf %74, %76 : vector<3x1xf32>
    %cst_31 = arith.constant 8.000000e-01 : f32
    %78 = vector.broadcast %cst_31 : f32 to vector<3x1xf32>
    %79 = arith.subf %67, %78 : vector<3x1xf32>
    %cst_32 = arith.constant 1.000000e+00 : f32
    %cst_33 = arith.constant 8.000000e-01 : f32
    %80 = arith.subf %cst_32, %cst_33 : f32
    %81 = vector.broadcast %80 : f32 to vector<3x1xf32>
    %82 = arith.divf %79, %81 : vector<3x1xf32>
    %cst_34 = arith.constant 0.000000e+00 : f32
    %83 = vector.broadcast %cst_34 : f32 to vector<1x3x128xf32>
    %c0_35 = arith.constant 0 : index
    %c0_36 = arith.constant 0 : index
    %c0_37 = arith.constant 0 : index
    %84 = vector.load %arg5[%c0_35, %c0_36, %c0_37] : memref<1x3x128xf32, #tpu.memory_space<vmem>>, vector<1x3x128xf32>
    tpu.vector_store %arg5[%c0_35, %c0_36, %c0_37], %83 {strides = array<i32>} : memref<1x3x128xf32, #tpu.memory_space<vmem>>, vector<1x3x128xf32>,
    %c0_38 = arith.constant 0 : index
    %c0_39 = arith.constant 0 : index
    %c0_40 = arith.constant 0 : index
    %85 = vector.load %arg5[%c0_38, %c0_39, %c0_40] : memref<1x3x128xf32, #tpu.memory_space<vmem>>, vector<1x3x1xf32>
    %86 = vector.shape_cast %85 : vector<1x3x1xf32> to vector<3x1xf32>
    %87 = vector.shape_cast %72 : vector<3x1xf32> to vector<1x3x1xf32>
    tpu.vector_store %arg5[%c0_38, %c0_39, %c0_40], %87 {strides = array<i32>} : memref<1x3x128xf32, #tpu.memory_space<vmem>>, vector<1x3x1xf32>,
    %c0_41 = arith.constant 0 : index
    %c0_42 = arith.constant 0 : index
    %c1 = arith.constant 1 : index
    %88 = vector.load %arg5[%c0_41, %c0_42, %c1] : memref<1x3x128xf32, #tpu.memory_space<vmem>>, vector<1x3x1xf32>
    %89 = vector.shape_cast %88 : vector<1x3x1xf32> to vector<3x1xf32>
    %90 = vector.shape_cast %77 : vector<3x1xf32> to vector<1x3x1xf32>
    tpu.vector_store %arg5[%c0_41, %c0_42, %c1], %90 {strides = array<i32>} : memref<1x3x128xf32, #tpu.memory_space<vmem>>, vector<1x3x1xf32>,
    %c0_43 = arith.constant 0 : index
    %c0_44 = arith.constant 0 : index
    %c2 = arith.constant 2 : index
    %91 = vector.load %arg5[%c0_43, %c0_44, %c2] : memref<1x3x128xf32, #tpu.memory_space<vmem>>, vector<1x3x1xf32>
    %92 = vector.shape_cast %91 : vector<1x3x1xf32> to vector<3x1xf32>
    %93 = vector.shape_cast %82 : vector<3x1xf32> to vector<1x3x1xf32>
    tpu.vector_store %arg5[%c0_43, %c0_44, %c2], %93 {strides = array<i32>} : memref<1x3x128xf32, #tpu.memory_space<vmem>>, vector<1x3x1xf32>,
    return
  }
  func.func @transform_0(%arg0: i32) -> (i32, i32, i32) {
    %c0_i32 = arith.constant 0 : i32
    %c0_i32_0 = arith.constant 0 : i32
    %c0_i32_1 = arith.constant 0 : i32
    return %arg0, %c0_i32, %c0_i32_0 : i32, i32, i32
  }
  func.func @transform_1(%arg0: i32) -> (i32, i32, i32) {
    %c0_i32 = arith.constant 0 : i32
    %c0_i32_0 = arith.constant 0 : i32
    %c0_i32_1 = arith.constant 0 : i32
    return %arg0, %c0_i32, %c0_i32_0 : i32, i32, i32
  }
  func.func @transform_2(%arg0: i32) -> (i32, i32, i32) {
    %c0_i32 = arith.constant 0 : i32
    %c0_i32_0 = arith.constant 0 : i32
    %c0_i32_1 = arith.constant 0 : i32
    return %arg0, %c0_i32, %c0_i32_0 : i32, i32, i32
  }
  func.func @transform_3(%arg0: i32) -> (i32, i32, i32) {
    %c0_i32 = arith.constant 0 : i32
    %c0_i32_0 = arith.constant 0 : i32
    %c0_i32_1 = arith.constant 0 : i32
    return %arg0, %c0_i32, %c0_i32_0 : i32, i32, i32
  }
  func.func @transform_4(%arg0: i32) -> (i32, i32, i32) {
    %c0_i32 = arith.constant 0 : i32
    %c0_i32_0 = arith.constant 0 : i32
    %c0_i32_1 = arith.constant 0 : i32
    return %arg0, %c0_i32, %c0_i32_0 : i32, i32, i32
  }
}

</mosaic_0001>

<llo_original>
// kernel: tpu_custom_call.1
$region0: #{tpu_custom_call.1}
  #allocation0 [shape = 'u32[]', space=smem, size = 0x4, offset = 0x4, fixed_abs, tag = 'smem constant byte address 0x4 - core index']
  #allocation1 [shape = 'u32[144,128]{1,0:T(1,128)}', space=vmem, size = 0x12000, scoped, tag = 'internal scratch']
  %s0 = inlined_call_operand.vmem [shape: s32[2,3,1], index: 0, kind: input, shape index: {}]
  %s1 = inlined_call_operand.vmem [shape: s32[2,3,1], index: 1, kind: input, shape index: {}]
  %s2 = inlined_call_operand.hbm [shape: bf16[6,16,32], index: 2, kind: input, shape index: {}]
  %s3 = inlined_call_operand.hbm [shape: bf16[6,32,128], index: 3, kind: input, shape index: {}]
  %s4 = inlined_call_operand.vmem [shape: f32[2,3,128], index: 4, kind: output, shape index: {}]
  %s5 = sld [smem:[#allocation0]]
  $region57: #{tpu_custom_call.1} parent=0
    _
  %s7 = ssub.s32 1, %s5
  %s8 = scalar_select 0, %s7, %s5
  $region1: #{tpu_custom_call.1} parent=0
    #allocation2 [shape = 'u8[24576]{0}', space=vmem, size = 0x6000, scoped, tag = 'input window, operand 2']
    #allocation3 [shape = 's32[2]{0}', space=sflag, size = 0x8, scoped, tag = 'scoped memory for tpu_custom_call.1']
    #allocation4 [shape = 'u8[49152]{0}', space=vmem, size = 0xc000, scoped, tag = 'input window, operand 3']
    #allocation5 [shape = 's32[2]{0}', space=sflag, size = 0x8, scoped, tag = 'scoped memory for tpu_custom_call.1']
    %9 = vsyncpa [#allocation3], 0
    %s10 = scalar_lea.sflag [#allocation3], 1
    %11 = vsyncpa %s10, 0
    %12 = vsyncpa [#allocation5], 0
    %s13 = scalar_lea.sflag [#allocation5], 1
    %14 = vsyncpa %s13, 0
    loop: start=0, step=1, limit=4
    $region2: #{tpu_custom_call.1} parent=1 // loop_pre_header
      _
    $region3: #{tpu_custom_call.1} parent=1 // loop_header
      %s16 = sphi 0, %s20
      %p17 = scmp.ge.s32.totalorder %s16, 4
      %s26 = sphi 0, %s28
      %s29 = sphi 0, %s26
      %s30 = sphi 0, %s29
      %s46 = sphi 0, %s30
      %s52 = sphi 0, %s54
      %s55 = sphi 0, %s52
      %s56 = sphi 0, %s55
      %s72 = sphi 0, %s56
      %s78 = sphi 0, %s80
      %s81 = sphi 0, %s78
      %s82 = sphi 0, %s81
      %s98 = sphi 0, %s82
      %s104 = sphi 0, %s106
      %s107 = sphi 0, %s104
      %s108 = sphi 0, %s107
      %s124 = sphi 0, %s108
      %s130 = sphi 0, %s132
      %s133 = sphi 0, %s130
      %s134 = sphi 0, %s133
      %s150 = sphi 0, %s134
    $region4: #{tpu_custom_call.1} parent=1 // loop_header_branch
      %19 = sbr.rel (%p17) target = $region8
    $region5: #{tpu_custom_call.1} parent=1 // loop_body
      %s21 = ssub.s32 %s16, 1
      %s22 = ssub.s32 %s16, 2
      %s23 = sadd.s32 %s16, 1
      %s24 = ssub.s32 %s16, %s23
      %p25 = scmp.eq.s32.totalorder %s24, 0
      %s27 = sadd.s32 %s26, 1
      %s28 = scalar_select %p25, %s26, %s27
      %p31 = pneg %p25
      %p32 = scmp.eq.s32.totalorder %s16, 1
      %p33 = por %p31, %p32
      %p34 = scmp.ne.s32.totalorder %s26, %s29
      %p35 = scmp.eq.s32.totalorder %s16, 0
      %p36 = por %p34, %p35
      %p37 = scmp.ne.s32.totalorder %s26, %s29
      %p38 = scmp.eq.s32.totalorder %s21, 1
      %p39 = por %p37, %p38
      %p40 = scmp.ne.s32.totalorder %s29, %s30
      %p41 = scmp.eq.s32.totalorder %s21, 0
      %p42 = por %p40, %p41
      %p43 = scmp.ne.s32.totalorder %s29, %s30
      %p44 = scmp.eq.s32.totalorder %s22, 1
      %p45 = por %p43, %p44
      %p47 = scmp.ne.s32.totalorder %s30, %s46
      %p48 = scmp.eq.s32.totalorder %s22, 0
      %p49 = por %p47, %p48
      %s50 = ssub.s32 %s16, %s23
      %p51 = scmp.eq.s32.totalorder %s50, 0
      %s53 = sadd.s32 %s52, 1
      %s54 = scalar_select %p51, %s52, %s53
      %p57 = pneg %p51
      %p58 = scmp.eq.s32.totalorder %s16, 1
      %p59 = por %p57, %p58
      %p60 = scmp.ne.s32.totalorder %s52, %s55
      %p61 = scmp.eq.s32.totalorder %s16, 0
      %p62 = por %p60, %p61
      %p63 = scmp.ne.s32.totalorder %s52, %s55
      %p64 = scmp.eq.s32.totalorder %s21, 1
      %p65 = por %p63, %p64
      %p66 = scmp.ne.s32.totalorder %s55, %s56
      %p67 = scmp.eq.s32.totalorder %s21, 0
      %p68 = por %p66, %p67
      %p69 = scmp.ne.s32.totalorder %s55, %s56
      %p70 = scmp.eq.s32.totalorder %s22, 1
      %p71 = por %p69, %p70
      %p73 = scmp.ne.s32.totalorder %s56, %s72
      %p74 = scmp.eq.s32.totalorder %s22, 0
      %p75 = por %p73, %p74
      %s76 = ssub.s32 %s16, %s23
      %p77 = scmp.eq.s32.totalorder %s76, 0
      %s79 = sadd.s32 %s78, 1
      %s80 = scalar_select %p77, %s78, %s79
      %p83 = pneg %p77
      %p84 = scmp.eq.s32.totalorder %s16, 1
      %p85 = por %p83, %p84
      %p86 = scmp.ne.s32.totalorder %s78, %s81
      %p87 = scmp.eq.s32.totalorder %s16, 0
      %p88 = por %p86, %p87
      %p89 = scmp.ne.s32.totalorder %s78, %s81
      %p90 = scmp.eq.s32.totalorder %s21, 1
      %p91 = por %p89, %p90
      %p92 = scmp.ne.s32.totalorder %s81, %s82
      %p93 = scmp.eq.s32.totalorder %s21, 0
      %p94 = por %p92, %p93
      %p95 = scmp.ne.s32.totalorder %s81, %s82
      %p96 = scmp.eq.s32.totalorder %s22, 1
      %p97 = por %p95, %p96
      %p99 = scmp.ne.s32.totalorder %s82, %s98
      %p100 = scmp.eq.s32.totalorder %s22, 0
      %p101 = por %p99, %p100
      %s102 = ssub.s32 %s16, %s23
      %p103 = scmp.eq.s32.totalorder %s102, 0
      %s105 = sadd.s32 %s104, 1
      %s106 = scalar_select %p103, %s104, %s105
      %p109 = pneg %p103
      %p110 = scmp.eq.s32.totalorder %s16, 1
      %p111 = por %p109, %p110
      %p112 = scmp.ne.s32.totalorder %s104, %s107
      %p113 = scmp.eq.s32.totalorder %s16, 0
      %p114 = por %p112, %p113
      %p115 = scmp.ne.s32.totalorder %s104, %s107
      %p116 = scmp.eq.s32.totalorder %s21, 1
      %p117 = por %p115, %p116
      %p118 = scmp.ne.s32.totalorder %s107, %s108
      %p119 = scmp.eq.s32.totalorder %s21, 0
      %p120 = por %p118, %p119
      %p121 = scmp.ne.s32.totalorder %s107, %s108
      %p122 = scmp.eq.s32.totalorder %s22, 1
      %p123 = por %p121, %p122
      %p125 = scmp.ne.s32.totalorder %s108, %s124
      %p126 = scmp.eq.s32.totalorder %s22, 0
      %p127 = por %p125, %p126
      %s128 = ssub.s32 %s16, %s23
      %p129 = scmp.eq.s32.totalorder %s128, 0
      %s131 = sadd.s32 %s130, 1
      %s132 = scalar_select %p129, %s130, %s131
      %p135 = pneg %p129
      %p136 = scmp.eq.s32.totalorder %s16, 1
      %p137 = por %p135, %p136
      %p138 = scmp.ne.s32.totalorder %s130, %s133
      %p139 = scmp.eq.s32.totalorder %s16, 0
      %p140 = por %p138, %p139
      %p141 = scmp.ne.s32.totalorder %s130, %s133
      %p142 = scmp.eq.s32.totalorder %s21, 1
      %p143 = por %p141, %p142
      %p144 = scmp.ne.s32.totalorder %s133, %s134
      %p145 = scmp.eq.s32.totalorder %s21, 0
      %p146 = por %p144, %p145
      %p147 = scmp.ne.s32.totalorder %s133, %s134
      %p148 = scmp.eq.s32.totalorder %s22, 1
      %p149 = por %p147, %p148
      %p151 = scmp.ne.s32.totalorder %s134, %s150
      %p152 = scmp.eq.s32.totalorder %s22, 0
      %p153 = por %p151, %p152
      %p154 = scmp.le.s32.totalorder 1, %s16
      %p155 = scmp.lt.s32.totalorder %s16, 3
      %p156 = pnand %p154, %p155
      %p157 = pneg %p156
      // Predicated region
      $region9: #{tpu_custom_call.1} parent=5 // pred_check
        _
      $region10: #{tpu_custom_call.1} parent=5 // pred_check_branch
        %159 = sbr.rel (%p156) target = $region12
      $region11: #{tpu_custom_call.1} parent=5 // pred_region
        %s160 = ssub.s32 %s16, 1
      $region12: #{tpu_custom_call.1} parent=5 // pred_fallthru
        _
      %p161 = scmp.lt.s32.totalorder %s16, 2
      // Predicated region
      $region13: #{tpu_custom_call.1} parent=5 // pred_check
        %p162 = pneg %p161
      $region14: #{tpu_custom_call.1} parent=5 // pred_check_branch
        %164 = sbr.rel (%p162) target = $region16
      $region15: #{tpu_custom_call.1} parent=5 // pred_region
        // Predicated region
        $region17: #{tpu_custom_call.1} parent=15 // pred_check
          %p165 = pneg %p36
        $region18: #{tpu_custom_call.1} parent=15 // pred_check_branch
          %167 = sbr.rel (%p165) target = $region20
        $region19: #{tpu_custom_call.1} parent=15 // pred_region
          %p168 = scmp.lt.s32.totalorder %s16, 1
          %s169 = scalar_select %p168, %s16, 1
          %s170 = smul.addr %s169, 4
          %s171 = scalar_lea.vmem %s0, %s170
        $region20: #{tpu_custom_call.1} parent=15 // pred_fallthru
          _
        // Predicated region
        $region21: #{tpu_custom_call.1} parent=15 // pred_check
          %p172 = pneg %p62
        $region22: #{tpu_custom_call.1} parent=15 // pred_check_branch
          %174 = sbr.rel (%p172) target = $region24
        $region23: #{tpu_custom_call.1} parent=15 // pred_region
          %p175 = scmp.lt.s32.totalorder %s16, 1
          %s176 = scalar_select %p175, %s16, 1
          %s177 = smul.addr %s176, 4
          %s178 = scalar_lea.vmem %s1, %s177
        $region24: #{tpu_custom_call.1} parent=15 // pred_fallthru
          _
        // Predicated region
        $region25: #{tpu_custom_call.1} parent=15 // pred_check
          %p179 = pneg %p88
        $region26: #{tpu_custom_call.1} parent=15 // pred_check_branch
          %181 = sbr.rel (%p179) target = $region28
        $region27: #{tpu_custom_call.1} parent=15 // pred_region
          %s182 = sand.u32 %s78, 1
          %s183 = scalar_lea.sflag [#allocation3], %s182
          %s184 = sand.u32 %s78, 1
          %s185 = smul.addr %s184, 24
          %s186 = scalar_lea.vmem [#allocation2], %s185
          %s187 = smul.u32 3, %s16
          %s189 = ssub.s32 384, 384
          %190 = vsyncadd %s183, %s189
          %s191 = smul.addr %s187, 2
          %s192 = smul.addr %s191, 64
          %s193 = scalar_lea.hbm %s2, %s192
          %s194 = sshll.u32 %s186, 4
          %s195 = int_to_ptr.vmem [resolvable:$true] %s194
          %200 = dma.hbm_to_vmem [thread:$0]  %s193, 384, %s195, %s183, 64, 64, 4
        $region28: #{tpu_custom_call.1} parent=15 // pred_fallthru
          _
        // Predicated region
        $region29: #{tpu_custom_call.1} parent=15 // pred_check
          %p201 = pneg %p114
        $region30: #{tpu_custom_call.1} parent=15 // pred_check_branch
          %203 = sbr.rel (%p201) target = $region32
        $region31: #{tpu_custom_call.1} parent=15 // pred_region
          %s204 = sand.u32 %s104, 1
          %s205 = scalar_lea.sflag [#allocation5], %s204
          %s206 = sand.u32 %s104, 1
          %s207 = smul.addr %s206, 48
          %s208 = scalar_lea.vmem [#allocation4], %s207
          %s209 = smul.u32 3, %s16
          %s211 = ssub.s32 768, 768
          %212 = vsyncadd %s205, %s211
          %s213 = smul.addr %s209, 4
          %s214 = smul.addr %s213, 64
          %s215 = scalar_lea.hbm %s3, %s214
          %s216 = sshll.u32 %s208, 4
          %s217 = int_to_ptr.vmem [resolvable:$true] %s216
          %222 = dma.hbm_to_vmem [thread:$0]  %s215, 768, %s217, %s205, 64, 64, 4
        $region32: #{tpu_custom_call.1} parent=15 // pred_fallthru
          _
      $region16: #{tpu_custom_call.1} parent=5 // pred_fallthru
        _
      %p223 = scmp.le.s32.totalorder 1, %s16
      %p224 = scmp.lt.s32.totalorder %s16, 3
      %p225 = pnand %p223, %p224
      %p226 = pneg %p225
      // Predicated region
      $region33: #{tpu_custom_call.1} parent=5 // pred_check
        _
      $region34: #{tpu_custom_call.1} parent=5 // pred_check_branch
        %228 = sbr.rel (%p225) target = $region36
      $region35: #{tpu_custom_call.1} parent=5 // pred_region
        %s229 = ssub.s32 %s16, 1
        %s230 = sand.u32 %s81, 1
        %s231 = scalar_lea.sflag [#allocation3], %s230
        %s232 = sand.u32 %s81, 1
        %s233 = smul.addr %s232, 24
        %s234 = scalar_lea.vmem [#allocation2], %s233
        // Predicated region
        $region37: #{tpu_custom_call.1} parent=35 // pred_check
          %p235 = pneg %p94
        $region38: #{tpu_custom_call.1} parent=35 // pred_check_branch
          %237 = sbr.rel (%p235) target = $region40
        $region39: #{tpu_custom_call.1} parent=35 // pred_region
          %238 = dma.done %s231, 384
        $region40: #{tpu_custom_call.1} parent=35 // pred_fallthru
          _
        %s239 = sand.u32 %s107, 1
        %s240 = scalar_lea.sflag [#allocation5], %s239
        %s241 = sand.u32 %s107, 1
        %s242 = smul.addr %s241, 48
        %s243 = scalar_lea.vmem [#allocation4], %s242
        // Predicated region
        $region41: #{tpu_custom_call.1} parent=35 // pred_check
          %p244 = pneg %p120
        $region42: #{tpu_custom_call.1} parent=35 // pred_check_branch
          %246 = sbr.rel (%p244) target = $region44
        $region43: #{tpu_custom_call.1} parent=35 // pred_region
          %247 = dma.done %s240, 768
        $region44: #{tpu_custom_call.1} parent=35 // pred_fallthru
          _
        %p248 = scmp.lt.s32.totalorder %s21, 1
        %s249 = scalar_select %p248, %s21, 1
        %s250 = smul.addr %s249, 4
        %s251 = scalar_lea.vmem %s0, %s250
        %p252 = pneg %p42
        %p253 = pneg %p39
        %p254 = scmp.lt.s32.totalorder %s21, 1
        %s255 = scalar_select %p254, %s21, 1
        %s256 = smul.addr %s255, 4
        %s257 = scalar_lea.vmem %s1, %s256
        %p258 = pneg %p68
        %p259 = pneg %p65
        %s260 = sand.u32 %s81, 1
        %s261 = scalar_lea.sflag [#allocation3], %s260
        %s262 = sand.u32 %s81, 1
        %s263 = smul.addr %s262, 24
        %s264 = scalar_lea.vmem [#allocation2], %s263
        %p265 = pneg %p94
        %p266 = pneg %p91
        %s267 = sand.u32 %s107, 1
        %s268 = scalar_lea.sflag [#allocation5], %s267
        %s269 = sand.u32 %s107, 1
        %s270 = smul.addr %s269, 48
        %s271 = scalar_lea.vmem [#allocation4], %s270
        %p272 = pneg %p120
        %p273 = pneg %p117
        %p274 = pneg %p146
        %p275 = pneg %p143
        %p276 = scmp.lt.s32.totalorder %s21, 1
        %s277 = scalar_select %p276, %s21, 1
        %s278 = smul.addr %s277, 4
        %s279 = scalar_lea.vmem %s4, %s278
        %p280 = scmp.lt.s32.totalorder %s21, 1
        %s281 = scalar_select %p280, %s21, 1
        %s282 = smul.addr %s281, 4
        %s283 = scalar_lea.vmem %s0, %s282
        %p284 = scmp.lt.s32.totalorder %s21, 1
        %s285 = scalar_select %p284, %s21, 1
        %s286 = smul.addr %s285, 4
        %s287 = scalar_lea.vmem %s1, %s286
        %s288 = smul.u32 3, %s21
        %s289 = smul.u32 3, %s21
        %p290 = scmp.lt.s32.totalorder %s21, 1
        %s291 = scalar_select %p290, %s21, 1
        %s292 = smul.addr %s291, 4
        %s293 = scalar_lea.vmem %s4, %s292
        %v295 = vld [vmem:[%s283] sm:$0x7]
        %v296 = vld [vmem:[%s287] sm:$0x7]
        %v297 = vcvt.s32.f32 %v295
        %v298 = vmax.f32 %v297, 1.0
        %v299 = vcvt.s32.f32 %v296
        %v300 = vmax.f32 %v299, 1.0
        %v301 = vld [vmem:[%s234] sm:$0xf]
        %v302 = vld [vmem:[%s234 + $0x4] sm:$0xf]
        %v303 = vld [vmem:[%s234 + $0x8] sm:$0xf]
        %v304 = vld [vmem:[%s234 + $0xc] sm:$0xf]
        %v305 = vld [vmem:[%s234 + $0x10] sm:$0xf]
        %v306 = vld [vmem:[%s234 + $0x14] sm:$0xf]
        %v307 = vld [vmem:[%s243] sm:$0xf]
        %v308 = vld [vmem:[%s243 + $0x4] sm:$0xf]
        %v309 = vld [vmem:[%s243 + $0x8] sm:$0xf]
        %v310 = vld [vmem:[%s243 + $0xc] sm:$0xf]
        %v311 = vld [vmem:[%s243 + $0x10] sm:$0xf]
        %v312 = vld [vmem:[%s243 + $0x14] sm:$0xf]
        %v313 = vld [vmem:[%s243 + $0x18] sm:$0xf]
        %v314 = vld [vmem:[%s243 + $0x1c] sm:$0xf]
        %v315 = vld [vmem:[%s243 + $0x20] sm:$0xf]
        %v316 = vld [vmem:[%s243 + $0x24] sm:$0xf]
        %v317 = vld [vmem:[%s243 + $0x28] sm:$0xf]
        %v318 = vld [vmem:[%s243 + $0x2c] sm:$0xf]
        %v319 = vunpack.c.l.bf16 %v301
        %v320 = vunpack.c.l.bf16 %v302
        %v321 = vunpack.c.l.bf16 %v303
        %v322 = vunpack.c.l.bf16 %v304
        %v323 = vunpack.c.l.bf16 %v305
        %v324 = vunpack.c.l.bf16 %v306
        %v325 = vunpack.c.l.bf16 %v307
        %v326 = vunpack.c.l.bf16 %v308
        %v327 = vunpack.c.l.bf16 %v309
        %v328 = vunpack.c.l.bf16 %v310
        %v329 = vunpack.c.l.bf16 %v311
        %v330 = vunpack.c.l.bf16 %v312
        %v331 = vunpack.c.l.bf16 %v313
        %v332 = vunpack.c.l.bf16 %v314
        %v333 = vunpack.c.l.bf16 %v315
        %v334 = vunpack.c.l.bf16 %v316
        %v335 = vunpack.c.l.bf16 %v317
        %v336 = vunpack.c.l.bf16 %v318
        %v337 = vmul.f32 %v319, %v319
        %v338 = vmul.f32 %v320, %v320
        %v339 = vmul.f32 %v321, %v321
        %v340 = vmul.f32 %v322, %v322
        %v341 = vmul.f32 %v323, %v323
        %v342 = vmul.f32 %v324, %v324
        %vm343 = vcmask 261120
        %v344 = vsel %vm343, %v337, 0.0
        %345 = vadd.xlane.f32.xlu0 %v344
        %v346 = vpop.xlane.xlu0 %345
        %v347 = vsel %vm343, %v338, 0.0
        %348 = vadd.xlane.f32.xlu0 %v347
        %v349 = vpop.xlane.xlu0 %348
        %v350 = vsel %vm343, %v339, 0.0
        %351 = vadd.xlane.f32.xlu0 %v350
        %v352 = vpop.xlane.xlu0 %351
        %v353 = vsel %vm343, %v340, 0.0
        %354 = vadd.xlane.f32.xlu0 %v353
        %v355 = vpop.xlane.xlu0 %354
        %v356 = vsel %vm343, %v341, 0.0
        %357 = vadd.xlane.f32.xlu0 %v356
        %v358 = vpop.xlane.xlu0 %357
        %v359 = vsel %vm343, %v342, 0.0
        %360 = vadd.xlane.f32.xlu0 %v359
        %v361 = vpop.xlane.xlu0 %360
        %v362 = vadd.f32 %v346, 1e-12
        %v363 = vadd.f32 %v349, 1e-12
        %v364 = vadd.f32 %v352, 1e-12
        %v365 = vadd.f32 %v355, 1e-12
        %v366 = vadd.f32 %v358, 1e-12
        %v367 = vadd.f32 %v361, 1e-12
        %v368 = vrsqrt.pop %v362
        %v369 = vrsqrt.pop %v363
        %v370 = vrsqrt.pop %v364
        %v371 = vrsqrt.pop %v365
        %v372 = vrsqrt.pop %v366
        %v373 = vrsqrt.pop %v367
        %v374 = vmul.f32 %v325, %v325
        %v375 = vmul.f32 %v326, %v326
        %v376 = vmul.f32 %v327, %v327
        %v377 = vmul.f32 %v328, %v328
        %v378 = vmul.f32 %v329, %v329
        %v379 = vmul.f32 %v330, %v330
        %v380 = vmul.f32 %v331, %v331
        %v381 = vmul.f32 %v332, %v332
        %v382 = vmul.f32 %v333, %v333
        %v383 = vmul.f32 %v334, %v334
        %v384 = vmul.f32 %v335, %v335
        %v385 = vmul.f32 %v336, %v336
        %v386 = vadd.f32 %v374, %v375
        %v387 = vadd.f32 %v386, %v376
        %v388 = vadd.f32 %v387, %v377
        %v389 = vrot.slane %v388, 4
        %v390 = vadd.f32 %v388, %v389
        %v391 = vrot.slane %v390, 2
        %v392 = vadd.f32 %v390, %v391
        %v393 = vrot.slane %v392, 1
        %v394 = vadd.f32 %v392, %v393
        %v395 = vadd.f32 %v378, %v379
        %v396 = vadd.f32 %v395, %v380
        %v397 = vadd.f32 %v396, %v381
        %v398 = vrot.slane %v397, 4
        %v399 = vadd.f32 %v397, %v398
        %v400 = vrot.slane %v399, 2
        %v401 = vadd.f32 %v399, %v400
        %v402 = vrot.slane %v401, 1
        %v403 = vadd.f32 %v401, %v402
        %v404 = vadd.f32 %v382, %v383
        %v405 = vadd.f32 %v404, %v384
        %v406 = vadd.f32 %v405, %v385
        %v407 = vrot.slane %v406, 4
        %v408 = vadd.f32 %v406, %v407
        %v409 = vrot.slane %v408, 2
        %v410 = vadd.f32 %v408, %v409
        %v411 = vrot.slane %v410, 1
        %v412 = vadd.f32 %v410, %v411
        %v413 = vadd.f32 %v394, 1e-12
        %v414 = vadd.f32 %v403, 1e-12
        %v415 = vadd.f32 %v412, 1e-12
        %v416 = vrsqrt.pop %v413
        %v417 = vrsqrt.pop %v414
        %v418 = vrsqrt.pop %v415
        %v421 = vunpack.c.l.b16 %v301
        %v422 = vunpack.c.l.b16 %v302
        %v423 = vpack.c.b16 %v422, %v421
        %v428 = vunpack.c.l.b16 %v307
        %v429 = vunpack.c.l.b16 %v308
        %v430 = vunpack.c.l.b16 %v309
        %v431 = vunpack.c.l.b16 %v310
        %v432 = vpack.c.b16 %v429, %v428
        %v433 = vpack.c.b16 %v431, %v430
        %v437 = vsel %vm343, %v423, 0
        %439 = vmatprep.subr.bf16.mxu0 0
        %440 = vmatpush1.bf16.msra.mxu0 0
        %441 = vmatprep.subr.bf16.mxu0 0
        %442 = vmatpush1.bf16.msra.mxu0 0
        %443 = vmatprep.subr.bf16.mxu0 0
        %444 = vmatpush1.bf16.msra.mxu0 0
        %445 = vmatprep.subr.bf16.mxu0 0
        %446 = vmatpush1.bf16.msra.mxu0 0
        %447 = vmatprep.subr.bf16.mxu0 0
        %448 = vmatpush1.bf16.msra.mxu0 0
        %449 = vmatprep.subr.bf16.mxu0 0
        %450 = vmatpush1.bf16.msra.mxu0 0
        %451 = vmatprep.subr.bf16.mxu0 0
        %452 = vmatpush1.bf16.msra.mxu0 %v433
        %453 = vmatprep.subr.bf16.mxu0 0
        %454 = vmatpush1.bf16.msra.mxu0 %v432
        %455 = vmatprep.subr.bf16.mxu0 0
        %456 = vmatpush2.bf16.msra.mxu0 0
        %457 = vmatprep.subr.bf16.mxu0 0
        %458 = vmatpush2.bf16.msra.mxu0 0
        %459 = vmatprep.subr.bf16.mxu0 0
        %460 = vmatpush2.bf16.msra.mxu0 0
        %461 = vmatprep.subr.bf16.mxu0 0
        %462 = vmatpush2.bf16.msra.mxu0 0
        %463 = vmatprep.subr.bf16.mxu0 0
        %464 = vmatpush2.bf16.msra.mxu0 0
        %465 = vmatprep.subr.bf16.mxu0 0
        %466 = vmatpush2.bf16.msra.mxu0 0
        %467 = vmatprep.subr.bf16.mxu0 0
        %468 = vmatpush2.bf16.msra.mxu0 0
        %469 = vmatprep.subr.bf16.mxu0 0
        %470 = vmatpush2.bf16.msra.mxu0 0
        %471 = vmatprep.mubr.bf16.mxu0 0
        %472 = vmatmul.mubr.bf16.gmra.mxu0 %v437
        %v473 = vpop.f32.mrf.mxu0
        %v474 = vadd.f32 0.0, %v473
        %v475 = vpop.f32.mrf.mxu0
        %v476 = vpop.f32.mrf.mxu0
        %v477 = vadd.f32 0.0, %v476
        %v478 = vpop.f32.mrf.mxu0
        %479 = vdwg.mxu0
        %v482 = vunpack.c.l.b16 %v303
        %v483 = vunpack.c.l.b16 %v304
        %v484 = vpack.c.b16 %v483, %v482
        %v489 = vunpack.c.l.b16 %v311
        %v490 = vunpack.c.l.b16 %v312
        %v491 = vunpack.c.l.b16 %v313
        %v492 = vunpack.c.l.b16 %v314
        %v493 = vpack.c.b16 %v490, %v489
        %v494 = vpack.c.b16 %v492, %v491
        %v498 = vsel %vm343, %v484, 0
        %500 = vmatprep.subr.bf16.mxu0 0
        %501 = vmatpush1.bf16.msra.mxu0 0
        %502 = vmatprep.subr.bf16.mxu0 0
        %503 = vmatpush1.bf16.msra.mxu0 0
        %504 = vmatprep.subr.bf16.mxu0 0
        %505 = vmatpush1.bf16.msra.mxu0 0
        %506 = vmatprep.subr.bf16.mxu0 0
        %507 = vmatpush1.bf16.msra.mxu0 0
        %508 = vmatprep.subr.bf16.mxu0 0
        %509 = vmatpush1.bf16.msra.mxu0 0
        %510 = vmatprep.subr.bf16.mxu0 0
        %511 = vmatpush1.bf16.msra.mxu0 0
        %512 = vmatprep.subr.bf16.mxu0 0
        %513 = vmatpush1.bf16.msra.mxu0 %v494
        %514 = vmatprep.subr.bf16.mxu0 0
        %515 = vmatpush1.bf16.msra.mxu0 %v493
        %516 = vmatprep.subr.bf16.mxu0 0
        %517 = vmatpush2.bf16.msra.mxu0 0
        %518 = vmatprep.subr.bf16.mxu0 0
        %519 = vmatpush2.bf16.msra.mxu0 0
        %520 = vmatprep.subr.bf16.mxu0 0
        %521 = vmatpush2.bf16.msra.mxu0 0
        %522 = vmatprep.subr.bf16.mxu0 0
        %523 = vmatpush2.bf16.msra.mxu0 0
        %524 = vmatprep.subr.bf16.mxu0 0
        %525 = vmatpush2.bf16.msra.mxu0 0
        %526 = vmatprep.subr.bf16.mxu0 0
        %527 = vmatpush2.bf16.msra.mxu0 0
        %528 = vmatprep.subr.bf16.mxu0 0
        %529 = vmatpush2.bf16.msra.mxu0 0
        %530 = vmatprep.subr.bf16.mxu0 0
        %531 = vmatpush2.bf16.msra.mxu0 0
        %532 = vmatprep.mubr.bf16.mxu0 0
        %533 = vmatmul.mubr.bf16.gmra.mxu0 %v498
        %v534 = vpop.f32.mrf.mxu0
        %v535 = vadd.f32 0.0, %v534
        %v536 = vpop.f32.mrf.mxu0
        %v537 = vpop.f32.mrf.mxu0
        %v538 = vadd.f32 0.0, %v537
        %v539 = vpop.f32.mrf.mxu0
        %540 = vdwg.mxu0
        %v543 = vunpack.c.l.b16 %v305
        %v544 = vunpack.c.l.b16 %v306
        %v545 = vpack.c.b16 %v544, %v543
        %v550 = vunpack.c.l.b16 %v315
        %v551 = vunpack.c.l.b16 %v316
        %v552 = vunpack.c.l.b16 %v317
        %v553 = vunpack.c.l.b16 %v318
        %v554 = vpack.c.b16 %v551, %v550
        %v555 = vpack.c.b16 %v553, %v552
        %v559 = vsel %vm343, %v545, 0
        %561 = vmatprep.subr.bf16.mxu0 0
        %562 = vmatpush1.bf16.msra.mxu0 0
        %563 = vmatprep.subr.bf16.mxu0 0
        %564 = vmatpush1.bf16.msra.mxu0 0
        %565 = vmatprep.subr.bf16.mxu0 0
        %566 = vmatpush1.bf16.msra.mxu0 0
        %567 = vmatprep.subr.bf16.mxu0 0
        %568 = vmatpush1.bf16.msra.mxu0 0
        %569 = vmatprep.subr.bf16.mxu0 0
        %570 = vmatpush1.bf16.msra.mxu0 0
        %571 = vmatprep.subr.bf16.mxu0 0
        %572 = vmatpush1.bf16.msra.mxu0 0
        %573 = vmatprep.subr.bf16.mxu0 0
        %574 = vmatpush1.bf16.msra.mxu0 %v555
        %575 = vmatprep.subr.bf16.mxu0 0
        %576 = vmatpush1.bf16.msra.mxu0 %v554
        %577 = vmatprep.subr.bf16.mxu0 0
        %578 = vmatpush2.bf16.msra.mxu0 0
        %579 = vmatprep.subr.bf16.mxu0 0
        %580 = vmatpush2.bf16.msra.mxu0 0
        %581 = vmatprep.subr.bf16.mxu0 0
        %582 = vmatpush2.bf16.msra.mxu0 0
        %583 = vmatprep.subr.bf16.mxu0 0
        %584 = vmatpush2.bf16.msra.mxu0 0
        %585 = vmatprep.subr.bf16.mxu0 0
        %586 = vmatpush2.bf16.msra.mxu0 0
        %587 = vmatprep.subr.bf16.mxu0 0
        %588 = vmatpush2.bf16.msra.mxu0 0
        %589 = vmatprep.subr.bf16.mxu0 0
        %590 = vmatpush2.bf16.msra.mxu0 0
        %591 = vmatprep.subr.bf16.mxu0 0
        %592 = vmatpush2.bf16.msra.mxu0 0
        %593 = vmatprep.mubr.bf16.mxu0 0
        %594 = vmatmul.mubr.bf16.gmra.mxu0 %v559
        %v595 = vpop.f32.mrf.mxu0
        %v596 = vadd.f32 0.0, %v595
        %v597 = vpop.f32.mrf.mxu0
        %v598 = vpop.f32.mrf.mxu0
        %v599 = vadd.f32 0.0, %v598
        %v600 = vpop.f32.mrf.mxu0
        %601 = vdwg.mxu0
        %v602 = vmul.f32 %v474, %v368
        %v603 = vmul.f32 %v477, %v369
        %v604 = vmul.f32 %v535, %v370
        %v605 = vmul.f32 %v538, %v371
        %v606 = vmul.f32 %v596, %v372
        %v607 = vmul.f32 %v599, %v373
        %v608 = vmul.f32 %v602, %v416
        %v609 = vmul.f32 %v603, %v416
        %v610 = vmul.f32 %v604, %v417
        %v611 = vmul.f32 %v605, %v417
        %v612 = vmul.f32 %v606, %v418
        %v613 = vmul.f32 %v607, %v418
        %v614 = vlaneseq
        %v615 = vshrl.u32 %v614, 7
        %v616 = vadd.s32 %v615, 8
        %v618 = vunpack.c.l.s4 1966171168
        %v619 = vunpack.c.0.s8 %v618
        %v620 = vlaneseq
        %v621 = vshrl.u32 %v620, 7
        %v622 = vsub.s32 %v619, %v621
        %v623 = vrot.slane %v295, %v622
        %v624 = vcombine.high %v623, %v623
        %v626 = vunpack.c.l.s4 1966171168
        %v627 = vunpack.c.0.s8 %v626
        %v628 = vlaneseq
        %v629 = vshrl.u32 %v628, 7
        %v630 = vsub.s32 %v627, %v629
        %v631 = vrot.slane %v623, %v630
        %v633 = vunpack.c.l.s4 1966171168
        %v634 = vunpack.c.0.s8 %v633
        %v635 = vlaneseq
        %v636 = vshrl.u32 %v635, 7
        %v637 = vsub.s32 %v634, %v636
        %v638 = vrot.slane %v624, %v637
        %v639 = vcombine.high %v631, %v631
        %v640 = vlaneseq
        %v641 = vshrl.u32 %v640, 7
        %v642 = vsub.s32 0, %v641
        %v643 = vrot.slane %v631, %v642
        %v644 = vlaneseq
        %v645 = vshrl.u32 %v644, 7
        %v646 = vsub.s32 0, %v645
        %v647 = vrot.slane %v638, %v646
        %v648 = vlaneseq
        %v649 = vshrl.u32 %v648, 7
        %v650 = vsub.s32 0, %v649
        %v651 = vrot.slane %v639, %v650
        %vm652 = vcmp.lt.s32.totalorder %v615, %v643
        %vm653 = vcmp.lt.s32.totalorder %v616, %v643
        %vm654 = vcmp.lt.s32.totalorder %v615, %v647
        %vm655 = vcmp.lt.s32.totalorder %v616, %v647
        %vm656 = vcmp.lt.s32.totalorder %v615, %v651
        %vm657 = vcmp.lt.s32.totalorder %v616, %v651
        %v658 = vlaneseq
        %v659 = vand.u32 %v658, 127
        %v661 = vunpack.c.l.s4 1966171168
        %v662 = vunpack.c.0.s8 %v661
        %v663 = vlaneseq
        %v664 = vshrl.u32 %v663, 7
        %v665 = vsub.s32 %v662, %v664
        %v666 = vrot.slane %v296, %v665
        %v667 = vcombine.high %v666, %v666
        %v669 = vunpack.c.l.s4 1966171168
        %v670 = vunpack.c.0.s8 %v669
        %v671 = vlaneseq
        %v672 = vshrl.u32 %v671, 7
        %v673 = vsub.s32 %v670, %v672
        %v674 = vrot.slane %v666, %v673
        %v676 = vunpack.c.l.s4 1966171168
        %v677 = vunpack.c.0.s8 %v676
        %v678 = vlaneseq
        %v679 = vshrl.u32 %v678, 7
        %v680 = vsub.s32 %v677, %v679
        %v681 = vrot.slane %v667, %v680
        %v682 = vcombine.high %v674, %v674
        %683 = vset.pattern.permute.xlu0 0
        %684 = vperm.xlu0 %683, %v674
        %v685 = vpop.permute.xlu0 %684
        %v686 = vlaneseq
        %v687 = vshrl.u32 %v686, 7
        %v688 = vsub.s32 0, %v687
        %v689 = vrot.slane %v685, %v688
        %690 = vset.pattern.permute.xlu0 0
        %691 = vperm.xlu0 %690, %v681
        %v692 = vpop.permute.xlu0 %691
        %v693 = vlaneseq
        %v694 = vshrl.u32 %v693, 7
        %v695 = vsub.s32 0, %v694
        %v696 = vrot.slane %v692, %v695
        %697 = vset.pattern.permute.xlu0 0
        %698 = vperm.xlu0 %697, %v682
        %v699 = vpop.permute.xlu0 %698
        %v700 = vlaneseq
        %v701 = vshrl.u32 %v700, 7
        %v702 = vsub.s32 0, %v701
        %v703 = vrot.slane %v699, %v702
        %vm704 = vcmp.lt.s32.totalorder %v659, %v689
        %vm705 = vcmp.lt.s32.totalorder %v659, %v696
        %vm706 = vcmp.lt.s32.totalorder %v659, %v703
        %v707 = vsel %vm704, 1, 0
        %v708 = vsel %vm705, 1, 0
        %v709 = vsel %vm706, 1, 0
        %vm710 = vcmp.eq.s32.totalorder %v707, 1
        %vm711 = vcmp.eq.s32.totalorder %v708, 1
        %vm712 = vcmp.eq.s32.totalorder %v709, 1
        %v713 = vsel %vm710, %v608, -1e+09
        %v714 = vsel %vm710, %v609, -1e+09
        %v715 = vsel %vm711, %v610, -1e+09
        %v716 = vsel %vm711, %v611, -1e+09
        %v717 = vsel %vm712, %v612, -1e+09
        %v718 = vsel %vm712, %v613, -1e+09
        %719 = vmax.xlane.f32.xlu0 %v713
        %v720 = vpop.xlane.xlu0 %719
        %721 = vmax.xlane.f32.xlu0 %v714
        %v722 = vpop.xlane.xlu0 %721
        %723 = vmax.xlane.f32.xlu0 %v715
        %v724 = vpop.xlane.xlu0 %723
        %725 = vmax.xlane.f32.xlu0 %v716
        %v726 = vpop.xlane.xlu0 %725
        %727 = vmax.xlane.f32.xlu0 %v717
        %v728 = vpop.xlane.xlu0 %727
        %729 = vmax.xlane.f32.xlu0 %v718
        %v730 = vpop.xlane.xlu0 %729
        %v731 = vsel %vm652, 1, 0
        %v732 = vsel %vm653, 1, 0
        %v733 = vsel %vm654, 1, 0
        %v734 = vsel %vm655, 1, 0
        %v735 = vsel %vm656, 1, 0
        %v736 = vsel %vm657, 1, 0
        %737 = vset.pattern.permute.xlu0 0
        %738 = vperm.xlu0 %737, %v731
        %v739 = vpop.permute.xlu0 %738
        %740 = vset.pattern.permute.xlu0 0
        %741 = vperm.xlu0 %740, %v732
        %v742 = vpop.permute.xlu0 %741
        %743 = vset.pattern.permute.xlu0 0
        %744 = vperm.xlu0 %743, %v733
        %v745 = vpop.permute.xlu0 %744
        %746 = vset.pattern.permute.xlu0 0
        %747 = vperm.xlu0 %746, %v734
        %v748 = vpop.permute.xlu0 %747
        %749 = vset.pattern.permute.xlu0 0
        %750 = vperm.xlu0 %749, %v735
        %v751 = vpop.permute.xlu0 %750
        %752 = vset.pattern.permute.xlu0 0
        %753 = vperm.xlu0 %752, %v736
        %v754 = vpop.permute.xlu0 %753
        %vm755 = vcmp.eq.s32.totalorder %v739, 1
        %vm756 = vcmp.eq.s32.totalorder %v742, 1
        %vm757 = vcmp.eq.s32.totalorder %v745, 1
        %vm758 = vcmp.eq.s32.totalorder %v748, 1
        %vm759 = vcmp.eq.s32.totalorder %v751, 1
        %vm760 = vcmp.eq.s32.totalorder %v754, 1
        %v761 = vsel %vm755, %v608, -1e+09
        %v762 = vsel %vm756, %v609, -1e+09
        %v763 = vsel %vm757, %v610, -1e+09
        %v764 = vsel %vm758, %v611, -1e+09
        %v765 = vsel %vm759, %v612, -1e+09
        %v766 = vsel %vm760, %v613, -1e+09
        %v767 = vmax.f32 %v761, %v762
        %v768 = vrot.slane %v767, 4
        %v769 = vmax.f32 %v767, %v768
        %v770 = vrot.slane %v769, 2
        %v771 = vmax.f32 %v769, %v770
        %v772 = vrot.slane %v771, 1
        %v773 = vmax.f32 %v771, %v772
        %v774 = vmax.f32 %v763, %v764
        %v775 = vrot.slane %v774, 4
        %v776 = vmax.f32 %v774, %v775
        %v777 = vrot.slane %v776, 2
        %v778 = vmax.f32 %v776, %v777
        %v779 = vrot.slane %v778, 1
        %v780 = vmax.f32 %v778, %v779
        %v781 = vmax.f32 %v765, %v766
        %v782 = vrot.slane %v781, 4
        %v783 = vmax.f32 %v781, %v782
        %v784 = vrot.slane %v783, 2
        %v785 = vmax.f32 %v783, %v784
        %v786 = vrot.slane %v785, 1
        %v787 = vmax.f32 %v785, %v786
        %v788 = vcvt.s32.f32 %v731
        %v789 = vcvt.s32.f32 %v732
        %v790 = vcvt.s32.f32 %v733
        %v791 = vcvt.s32.f32 %v734
        %v792 = vcvt.s32.f32 %v735
        %v793 = vcvt.s32.f32 %v736
        %v794 = vmul.f32 %v720, %v788
        %v795 = vmul.f32 %v722, %v789
        %v796 = vmul.f32 %v724, %v790
        %v797 = vmul.f32 %v726, %v791
        %v798 = vmul.f32 %v728, %v792
        %v799 = vmul.f32 %v730, %v793
        %vm800 = vcmask 7168
        %v801 = vsel %vm800, %v794, 0.0
        %v802 = vsel %vm800, %v795, 0.0
        %v803 = vadd.f32 %v801, %v802
        %v804 = vrot.slane %v803, 4
        %v805 = vadd.f32 %v803, %v804
        %v806 = vrot.slane %v805, 2
        %v807 = vadd.f32 %v805, %v806
        %v808 = vrot.slane %v807, 1
        %v809 = vadd.f32 %v807, %v808
        %v810 = vsel %vm800, %v796, 0.0
        %v811 = vsel %vm800, %v797, 0.0
        %v812 = vadd.f32 %v810, %v811
        %v813 = vrot.slane %v812, 4
        %v814 = vadd.f32 %v812, %v813
        %v815 = vrot.slane %v814, 2
        %v816 = vadd.f32 %v814, %v815
        %v817 = vrot.slane %v816, 1
        %v818 = vadd.f32 %v816, %v817
        %v819 = vsel %vm800, %v798, 0.0
        %v820 = vsel %vm800, %v799, 0.0
        %v821 = vadd.f32 %v819, %v820
        %v822 = vrot.slane %v821, 4
        %v823 = vadd.f32 %v821, %v822
        %v824 = vrot.slane %v823, 2
        %v825 = vadd.f32 %v823, %v824
        %v826 = vrot.slane %v825, 1
        %v827 = vadd.f32 %v825, %v826
        %v829 = vrot.slane %v298, 1
        %v830 = vrot.slane %v298, 2
        %v834 = vrcp.pop %v298
        %v835 = vmul.f32 %v809, %v834
        %v836 = vrcp.pop %v829
        %v837 = vmul.f32 %v818, %v836
        %v838 = vrcp.pop %v830
        %v839 = vmul.f32 %v827, %v838
        %v840 = vcvt.s32.f32 %v707
        %v841 = vcvt.s32.f32 %v708
        %v842 = vcvt.s32.f32 %v709
        %v843 = vmul.f32 %v773, %v840
        %v844 = vmul.f32 %v780, %v841
        %v845 = vmul.f32 %v787, %v842
        %846 = vadd.xlane.f32.xlu0 %v843
        %v847 = vpop.xlane.xlu0 %846
        %848 = vadd.xlane.f32.xlu0 %v844
        %v849 = vpop.xlane.xlu0 %848
        %850 = vadd.xlane.f32.xlu0 %v845
        %v851 = vpop.xlane.xlu0 %850
        %v853 = vlaneseq
        %v854 = vshrl.u32 %v853, 7
        %v855 = vsub.s32 0, %v854
        %v856 = vrot.slane %v300, %v855
        %858 = vbcast.lane.b32.xlu0 %v856, 256
        %v859 = vpop.permute.xlu0 %858
        %v860 = vlaneseq
        %v861 = vshrl.u32 %v860, 7
        %v862 = vsub.s32 1, %v861
        %v863 = vrot.slane %v300, %v862
        %865 = vbcast.lane.b32.xlu0 %v863, 256
        %v866 = vpop.permute.xlu0 %865
        %v867 = vlaneseq
        %v868 = vshrl.u32 %v867, 7
        %v869 = vsub.s32 2, %v868
        %v870 = vrot.slane %v300, %v869
        %872 = vbcast.lane.b32.xlu0 %v870, 256
        %v873 = vpop.permute.xlu0 %872
        %v877 = vrcp.pop %v859
        %v878 = vmul.f32 %v847, %v877
        %v879 = vrcp.pop %v866
        %v880 = vmul.f32 %v849, %v879
        %v881 = vrcp.pop %v873
        %v882 = vmul.f32 %v851, %v881
        %v883 = vmul.f32 %v835, 2.0
        %v884 = vmul.f32 %v837, 2.0
        %v885 = vmul.f32 %v839, 2.0
        %v886 = vmul.f32 %v883, %v878
        %v887 = vmul.f32 %v884, %v880
        %v888 = vmul.f32 %v885, %v882
        %v889 = vadd.f32 %v835, %v878
        %v890 = vadd.f32 %v837, %v880
        %v891 = vadd.f32 %v839, %v882
        %v892 = vadd.f32 %v889, 1e-12
        %v893 = vadd.f32 %v890, 1e-12
        %v894 = vadd.f32 %v891, 1e-12
        %v895 = vrcp.pop %v892
        %v896 = vmul.f32 %v886, %v895
        %v897 = vrcp.pop %v893
        %v898 = vmul.f32 %v887, %v897
        %v899 = vrcp.pop %v894
        %v900 = vmul.f32 %v888, %v899
        %v901 = vsub.f32 %v835, 0.8
        %v902 = vsub.f32 %v837, 0.8
        %v903 = vsub.f32 %v839, 0.8
        %v904 = vrcp.pop 0.19999999
        %v905 = vmul.f32 %v901, %v904
        %v906 = vmul.f32 %v902, %v904
        %v907 = vmul.f32 %v903, %v904
        %v908 = vsub.f32 %v878, 0.8
        %v909 = vsub.f32 %v880, 0.8
        %v910 = vsub.f32 %v882, 0.8
        %v911 = vmul.f32 %v908, %v904
        %v912 = vmul.f32 %v909, %v904
        %v913 = vmul.f32 %v910, %v904
        %v914 = vsub.f32 %v896, 0.8
        %v915 = vsub.f32 %v898, 0.8
        %v916 = vsub.f32 %v900, 0.8
        %v917 = vmul.f32 %v914, %v904
        %v918 = vmul.f32 %v915, %v904
        %v919 = vmul.f32 %v916, %v904
        %920 = vst [vmem:[%s293] sm:$0x7] 0.0
        %v924 = vrot.slane %v906, 7
        %vm925 = vcmask 1041409
        %v926 = vsel %vm925, %v924, %v905
        %v927 = vrot.slane %v907, 6
        %vm928 = vcmask 1042434
        %v929 = vsel %vm928, %v927, %v926
        %vm931 = vcmask 2048
        %932 = vst.msk [vmem:[%s293] sm:$0x7] %vm931, %v929
        %v936 = vrot.slane %v912, 7
        %v937 = vsel %vm925, %v936, %v911
        %v938 = vrot.slane %v913, 6
        %v939 = vsel %vm928, %v938, %v937
        %940 = vrot.lane.b32.xlu0 %v939, 1
        %v941 = vpop.permute.xlu0 %940
        %vm943 = vcmask 10248
        %944 = vst.msk [vmem:[%s293] sm:$0x7] %vm943, %v941
        %v948 = vrot.slane %v918, 7
        %v949 = vsel %vm925, %v948, %v917
        %v950 = vrot.slane %v919, 6
        %v951 = vsel %vm928, %v950, %v949
        %952 = vrot.lane.b32.xlu0 %v951, 2
        %v953 = vpop.permute.xlu0 %952
        %vm955 = vcmask 18448
        %956 = vst.msk [vmem:[%s293] sm:$0x7] %vm955, %v953
        %p957 = scmp.lt.s32.totalorder %s21, 1
        %s958 = scalar_select %p957, %s21, 1
        %s959 = smul.addr %s958, 4
        %s960 = scalar_lea.vmem %s4, %s959
        // Predicated region
        $region45: #{tpu_custom_call.1} parent=35 // pred_check
          %p961 = pneg %p143
        $region46: #{tpu_custom_call.1} parent=35 // pred_check_branch
          %963 = sbr.rel (%p961) target = $region48
        $region47: #{tpu_custom_call.1} parent=35 // pred_region
          _
        $region48: #{tpu_custom_call.1} parent=35 // pred_fallthru
          _
      $region36: #{tpu_custom_call.1} parent=5 // pred_fallthru
        _
      %p964 = scmp.le.s32.totalorder 2, %s16
      // Predicated region
      $region49: #{tpu_custom_call.1} parent=5 // pred_check
        %p965 = pneg %p964
      $region50: #{tpu_custom_call.1} parent=5 // pred_check_branch
        %967 = sbr.rel (%p965) target = $region52
      $region51: #{tpu_custom_call.1} parent=5 // pred_region
        %s968 = ssub.s32 %s16, 2
        // Predicated region
        $region53: #{tpu_custom_call.1} parent=51 // pred_check
          %p969 = pneg %p149
        $region54: #{tpu_custom_call.1} parent=51 // pred_check_branch
          %971 = sbr.rel (%p969) target = $region56
        $region55: #{tpu_custom_call.1} parent=51 // pred_region
          %p972 = scmp.lt.s32.totalorder %s22, 1
          %s973 = scalar_select %p972, %s22, 1
          %s974 = smul.addr %s973, 4
          %s975 = scalar_lea.vmem %s4, %s974
        $region56: #{tpu_custom_call.1} parent=51 // pred_fallthru
          _
      $region52: #{tpu_custom_call.1} parent=5 // pred_fallthru
        _
    $region6: #{tpu_custom_call.1} parent=1 // loop_footer
      %s20 = sadd.s32 1, %s16
    $region7: #{tpu_custom_call.1} parent=1 // loop_footer_branch
      %15 = sbr.rel target = $region3
    $region8: #{tpu_custom_call.1} parent=1 // loop_exit
      _
    %976 = vsyncpa [#allocation3], 1
    %s977 = scalar_lea.sflag [#allocation3], 1
    %978 = vsyncpa %s977, 1
    %979 = vsyncpa [#allocation5], 1
    %s980 = scalar_lea.sflag [#allocation5], 1
    %981 = vsyncpa %s980, 1

</llo_original>
